<compile_context>
chip_gen: v7x
topology: tpu7x:2x2x1
jax: 0.10.0
libtpu: 0.0.40
codegen_flags: <defaults>
</compile_context>

<pallas_src>
import jax
import jax.numpy as jnp
from jax import lax
from jax.experimental import pallas as pl
from jax.experimental.pallas import tpu as pltpu


def _lstm_kernel(x_ref, wih_ref, whh_ref, b_ref, wfc_ref, bfc_ref,
                 out_ref, xp_sc):
    # x_ref:   (T*B, D)   time-major, flattened
    # wih_ref: (D, 4H)    W_ih^T
    # whh_ref: (4H, 4H)   W_hh^T zero-padded in rows [H:4H)
    # b_ref:   (1, 4H)    b_ih + b_hh
    # wfc_ref: (1, 4H)    fc weight, zero-padded in lanes [H:4H)
    # bfc_ref: (1, 1)     fc bias
    # out_ref: (B, 1)     final prediction
    # xp_sc:   (T*B, 4H)  VMEM scratch for the hoisted input projection
    TB, G = xp_sc.shape
    B = out_ref.shape[0]
    T = TB // B
    H = G // 4

    # ---- Prologue: hoist the input projection off the serial recurrence ----
    # One MXU matmul for all time steps, stored flat (no reshape/relayout).
    xp_sc[...] = (jnp.dot(x_ref[...], wih_ref[...],
                          preferred_element_type=jnp.float32) + b_ref[...])

    # Constant lane vectors for the single-sigmoid activation trick
    # (hoisted: broadcast_in_dim is not CSE'd by JAX):
    #   g-lanes: tanh(x) = 2*sigmoid(2*x) - 1 ; other lanes: sigmoid(x).
    lane = lax.broadcasted_iota(jnp.int32, (1, G), 1)
    g_mask = (lane >= 2 * H) & (lane < 3 * H)
    sel2 = jnp.where(g_mask, 2.0, 1.0).astype(jnp.float32)   # pre & post scale
    off = jnp.where(g_mask, -1.0, 0.0).astype(jnp.float32)   # post offset

    w_hh = whh_ref[...]          # (4H, 4H), zero-padded rows; loaded once
    w_fc = wfc_ref[...]          # (1, 4H), zero-padded lanes

    def step(t, carry):
        h_pad, c_pad = carry     # (B, 4H) each; valid data in lanes [0:H)
        start = pl.multiple_of(t * B, B)
        # Only the h-dependent matmul remains on the serial critical path.
        gates = xp_sc[pl.ds(start, B), :] + jnp.dot(
            h_pad, w_hh, preferred_element_type=jnp.float32)   # (B, 4H)
        # Single EUP pass for all four gates: [sig(i) | sig(f) | tanh(g) | sig(o)].
        acts = jax.nn.sigmoid(gates * sel2) * sel2 + off
        # Align the f/g/o quarters onto lanes [0:H) with XLU rolls
        # (no quarter-vreg lane slices / relayouts on the dependency chain).
        acts_f = pltpu.roll(acts, shift=3 * H, axis=1)   # lanes [0:H) = sig(f)
        acts_g = pltpu.roll(acts, shift=2 * H, axis=1)   # lanes [0:H) = tanh(g)
        acts_o = pltpu.roll(acts, shift=1 * H, axis=1)   # lanes [0:H) = sig(o)
        c_new = acts_f * c_pad + acts * acts_g           # valid in lanes [0:H)
        h_new = acts_o * jnp.tanh(c_new)                 # valid in lanes [0:H)
        # Lanes >= H carry bounded garbage; zero rows of w_hh (and zero lanes
        # of w_fc in the epilogue) make it irrelevant.
        return (h_new, c_new)

    h0 = jnp.zeros((B, G), jnp.float32)
    c0 = jnp.zeros((B, G), jnp.float32)
    # Fully unrolled recurrence: scheduler sees the whole chain, h/c in vregs.
    h_last, _ = lax.fori_loop(0, T, step, (h0, c0), unroll=True)

    # ---- Epilogue: fused final Linear (VPU mul + XLU lane reduce) ----
    out_ref[...] = (jnp.sum(h_last * w_fc, axis=-1, keepdims=True)
                    + bfc_ref[...]).astype(out_ref.dtype)


def lstm_baseline_forward(x, w_ih, w_hh, b_ih, b_hh, w_fc, b_fc):
    """x: (B, T, D) batch_first; params in PyTorch layout:
         w_ih: (4H, D), w_hh: (4H, H), b_ih/b_hh: (4H,),
         w_fc: (1, H),  b_fc: (1,)
       returns (B, 1)."""
    B, T, D = x.shape
    H = w_hh.shape[1]
    G = 4 * H

    # Time-major and flattened so the input projection is a single matmul.
    x_tm = jnp.transpose(x, (1, 0, 2)).astype(jnp.float32).reshape(T * B, D)
    wih_t = jnp.transpose(w_ih).astype(jnp.float32)                    # (D, 4H)
    # Zero-pad W_hh^T to (4H, 4H): h is carried 128-lane padded, padded rows
    # kill the garbage-lane contributions.
    whh_pad = jnp.zeros((G, G), jnp.float32).at[:H, :].set(
        jnp.transpose(w_hh).astype(jnp.float32))
    b = (b_ih + b_hh).astype(jnp.float32).reshape(1, G)                # (1, 4H)
    wfc_pad = jnp.zeros((1, G), jnp.float32).at[:, :H].set(
        w_fc.astype(jnp.float32).reshape(1, H))                        # (1, 4H)
    bfc = b_fc.astype(jnp.float32).reshape(1, 1)                       # (1, 1)

    grid_spec = pltpu.PrefetchScalarGridSpec(
        num_scalar_prefetch=0,
        grid=(1,),   # whole recurrence in one invocation; no per-step grid overhead
        in_specs=[
            pl.BlockSpec((T * B, D), lambda i: (0, 0)),
            pl.BlockSpec((D, G), lambda i: (0, 0)),
            pl.BlockSpec((G, G), lambda i: (0, 0)),
            pl.BlockSpec((1, G), lambda i: (0, 0)),
            pl.BlockSpec((1, G), lambda i: (0, 0)),
            pl.BlockSpec((1, 1), lambda i: (0, 0)),
        ],
        out_specs=pl.BlockSpec((B, 1), lambda i: (0, 0)),
        scratch_shapes=[
            pltpu.VMEM((T * B, G), jnp.float32),   # flat hoisted input projection
        ],
    )

    return pl.pallas_call(
        _lstm_kernel,
        out_shape=jax.ShapeDtypeStruct((B, 1), jnp.float32),
        grid_spec=grid_spec,
        compiler_params=pltpu.CompilerParams(
            dimension_semantics=("arbitrary",)),
    )(x_tm, wih_t, whh_pad, b, wfc_pad, bfc)


def _reference_forward(x, w_ih, w_hh, b_ih, b_hh, w_fc, b_fc):
    """Pure-JAX reference matching torch.nn.LSTM (batch_first) + Linear."""
    B, T, D = x.shape
    H = w_hh.shape[1]
    h = jnp.zeros((B, H), jnp.float32)
    c = jnp.zeros((B, H), jnp.float32)
    prec = lax.Precision.HIGHEST

    def step(carry, x_t):
        h, c = carry
        gates = (jnp.dot(x_t, w_ih.T, precision=prec)
                 + jnp.dot(h, w_hh.T, precision=prec) + b_ih + b_hh)
        i = jax.nn.sigmoid(gates[:, 0 * H:1 * H])
        f = jax.nn.sigmoid(gates[:, 1 * H:2 * H])
        g = jnp.tanh(gates[:, 2 * H:3 * H])
        o = jax.nn.sigmoid(gates[:, 3 * H:4 * H])
        c = f * c + i * g
        h = o * jnp.tanh(c)
        return (h, c), None

    (h, _), _ = lax.scan(step, (h, c), jnp.transpose(x, (1, 0, 2)))
    return jnp.dot(h, w_fc.T, precision=prec) + b_fc


if __name__ == "__main__":
    # Small shapes consistent with the module: batch=2, seq=8, input_dim=4, hidden=32.
    B, T, D, H = 2, 8, 4, 32

    key = jax.random.PRNGKey(0)
    kx, k1, k2, k3, k4, k5, k6 = jax.random.split(key, 7)

    x = jax.random.normal(kx, (B, T, D), dtype=jnp.float32)

    # Deterministic parameter init (uniform in [-1/sqrt(H), 1/sqrt(H)], as PyTorch does).
    s = 1.0 / jnp.sqrt(jnp.float32(H))
    w_ih = jax.random.uniform(k1, (4 * H, D), jnp.float32, -s, s)
    w_hh = jax.random.uniform(k2, (4 * H, H), jnp.float32, -s, s)
    b_ih = jax.random.uniform(k3, (4 * H,), jnp.float32, -s, s)
    b_hh = jax.random.uniform(k4, (4 * H,), jnp.float32, -s, s)
    w_fc = jax.random.uniform(k5, (1, H), jnp.float32, -s, s)
    b_fc = jax.random.uniform(k6, (1,), jnp.float32, -s, s)

    out = lstm_baseline_forward(x, w_ih, w_hh, b_ih, b_hh, w_fc, b_fc)
    out = jax.block_until_ready(out)

    ref = _reference_forward(x, w_ih, w_hh, b_ih, b_hh, w_fc, b_fc)
    assert out.shape == (B, 1)
    assert jnp.allclose(out, ref, atol=1e-4, rtol=1e-4), (out, ref)

    print("KERNEL_OK")
</pallas_src>

<mosaic_0001>
module attributes {stable_mosaic.version = 11 : i64} {
  func.func @_lstm_kernel(%arg0: i32, %arg1: memref<16x4xf32, #tpu.memory_space<vmem>>, %arg2: memref<4x128xf32, #tpu.memory_space<vmem>>, %arg3: memref<128x128xf32, #tpu.memory_space<vmem>>, %arg4: memref<1x128xf32, #tpu.memory_space<vmem>>, %arg5: memref<1x128xf32, #tpu.memory_space<vmem>>, %arg6: memref<1x1xf32, #tpu.memory_space<vmem>>, %arg7: memref<2x1xf32, #tpu.memory_space<vmem>>, %arg8: memref<16x128xf32, #tpu.memory_space<vmem>>) attributes {dimension_semantics = [#tpu.dimension_semantics<arbitrary>], iteration_bounds = array<i64: 1>, scalar_prefetch = 0 : i64, scratch_operands = 1 : i64, tpu.core_type = #tpu.core_type<tc>, window_params = [{pipeline_mode = #tpu.pipeline_mode<synchronous>, transform_indices = @transform_0, window_bounds = array<i64: 16, 4>}, {pipeline_mode = #tpu.pipeline_mode<synchronous>, transform_indices = @transform_1, window_bounds = array<i64: 4, 128>}, {pipeline_mode = #tpu.pipeline_mode<synchronous>, transform_indices = @transform_2, window_bounds = array<i64: 128, 128>}, {pipeline_mode = #tpu.pipeline_mode<synchronous>, transform_indices = @transform_3, window_bounds = array<i64: 1, 128>}, {pipeline_mode = #tpu.pipeline_mode<synchronous>, transform_indices = @transform_4, window_bounds = array<i64: 1, 128>}, {pipeline_mode = #tpu.pipeline_mode<synchronous>, transform_indices = @transform_5, window_bounds = array<i64: 1, 1>}, {pipeline_mode = #tpu.pipeline_mode<synchronous>, transform_indices = @transform_6, window_bounds = array<i64: 2, 1>}]} {
    %c0 = arith.constant 0 : index
    %c0_0 = arith.constant 0 : index
    %0 = vector.load %arg1[%c0, %c0_0] : memref<16x4xf32, #tpu.memory_space<vmem>>, vector<16x4xf32>
    %c0_1 = arith.constant 0 : index
    %c0_2 = arith.constant 0 : index
    %1 = vector.load %arg2[%c0_1, %c0_2] : memref<4x128xf32, #tpu.memory_space<vmem>>, vector<4x128xf32>
    %cst = arith.constant dense<0.000000e+00> : vector<16x128xf32>
    %2 = tpu.matmul %0, %1, %cst {dimension_numbers = #tpu.dot_dimension_numbers<[1], [0], [0], [1], [0, 0, 1, 1], [], []>} : vector<16x4xf32>, vector<4x128xf32>, vector<16x128xf32> -> vector<16x128xf32>
    %c0_3 = arith.constant 0 : index
    %c0_4 = arith.constant 0 : index
    %3 = vector.load %arg4[%c0_3, %c0_4] : memref<1x128xf32, #tpu.memory_space<vmem>>, vector<1x128xf32>
    %4 = vector.broadcast %3 : vector<1x128xf32> to vector<16x128xf32>
    %5 = arith.addf %2, %4 : vector<16x128xf32>
    %c0_5 = arith.constant 0 : index
    %c0_6 = arith.constant 0 : index
    %6 = vector.load %arg8[%c0_5, %c0_6] : memref<16x128xf32, #tpu.memory_space<vmem>>, vector<16x128xf32>
    tpu.vector_store %arg8[%c0_5, %c0_6], %5 {strides = array<i32>} : memref<16x128xf32, #tpu.memory_space<vmem>>, vector<16x128xf32>,
    %7 = tpu.iota {dimensions = array<i32: 1>} : vector<1x128xi32>
    %c64_i32 = arith.constant 64 : i32
    %8 = vector.broadcast %c64_i32 : i32 to vector<1x128xi32>
    %9 = arith.cmpi sge, %7, %8 : vector<1x128xi32>
    %c96_i32 = arith.constant 96 : i32
    %10 = vector.broadcast %c96_i32 : i32 to vector<1x128xi32>
    %11 = arith.cmpi slt, %7, %10 : vector<1x128xi32>
    %12 = arith.andi %9, %11 : vector<1x128xi1>
    %cst_7 = arith.constant 2.000000e+00 : f32
    %cst_8 = arith.constant 1.000000e+00 : f32
    %13 = vector.broadcast %cst_7 : f32 to vector<1x128xf32>
    %14 = vector.broadcast %cst_8 : f32 to vector<1x128xf32>
    %15 = arith.select %12, %13, %14 : vector<1x128xi1>, vector<1x128xf32>
    %cst_9 = arith.constant -1.000000e+00 : f32
    %cst_10 = arith.constant 0.000000e+00 : f32
    %16 = vector.broadcast %cst_9 : f32 to vector<1x128xf32>
    %17 = vector.broadcast %cst_10 : f32 to vector<1x128xf32>
    %18 = arith.select %12, %16, %17 : vector<1x128xi1>, vector<1x128xf32>
    %c0_11 = arith.constant 0 : index
    %c0_12 = arith.constant 0 : index
    %19 = vector.load %arg3[%c0_11, %c0_12] : memref<128x128xf32, #tpu.memory_space<vmem>>, vector<128x128xf32>
    %c0_13 = arith.constant 0 : index
    %c0_14 = arith.constant 0 : index
    %20 = vector.load %arg5[%c0_13, %c0_14] : memref<1x128xf32, #tpu.memory_space<vmem>>, vector<1x128xf32>
    %cst_15 = arith.constant 0.000000e+00 : f32
    %21 = vector.broadcast %cst_15 : f32 to vector<2x128xf32>
    %cst_16 = arith.constant 0.000000e+00 : f32
    %22 = vector.broadcast %cst_16 : f32 to vector<2x128xf32>
    %c0_i32 = arith.constant 0 : i32
    %c2_i32 = arith.constant 2 : i32
    %23 = arith.muli %c0_i32, %c2_i32 : i32
    %24 = tpu.assume_multiple %23, 2 : i32
    %25 = arith.index_cast %24 : i32 to index
    %c0_17 = arith.constant 0 : index
    %26 = vector.load %arg8[%25, %c0_17] : memref<16x128xf32, #tpu.memory_space<vmem>>, vector<2x128xf32>
    %cst_18 = arith.constant dense<0.000000e+00> : vector<2x128xf32>
    %27 = tpu.matmul %21, %19, %cst_18 {dimension_numbers = #tpu.dot_dimension_numbers<[1], [0], [0], [1], [0, 0, 1, 1], [], []>} : vector<2x128xf32>, vector<128x128xf32>, vector<2x128xf32> -> vector<2x128xf32>
    %28 = arith.addf %26, %27 : vector<2x128xf32>
    %29 = vector.broadcast %15 : vector<1x128xf32> to vector<2x128xf32>
    %30 = arith.mulf %28, %29 : vector<2x128xf32>
    %31 = arith.negf %30 : vector<2x128xf32>
    %32 = math.exp %31 : vector<2x128xf32>
    %cst_19 = arith.constant 1.000000e+00 : f32
    %33 = vector.broadcast %cst_19 : f32 to vector<2x128xf32>
    %34 = arith.addf %33, %32 : vector<2x128xf32>
    %35 = arith.divf %33, %34 : vector<2x128xf32>
    %36 = vector.broadcast %15 : vector<1x128xf32> to vector<2x128xf32>
    %37 = arith.mulf %35, %36 : vector<2x128xf32>
    %38 = vector.broadcast %18 : vector<1x128xf32> to vector<2x128xf32>
    %39 = arith.addf %37, %38 : vector<2x128xf32>
    %c96_i32_20 = arith.constant 96 : i32
    %40 = tpu.dynamic_rotate %39 by %c96_i32_20 dim 1 : vector<2x128xf32>, i32 -> vector<2x128xf32>
    %c64_i32_21 = arith.constant 64 : i32
    %41 = tpu.dynamic_rotate %39 by %c64_i32_21 dim 1 : vector<2x128xf32>, i32 -> vector<2x128xf32>
    %c32_i32 = arith.constant 32 : i32
    %42 = tpu.dynamic_rotate %39 by %c32_i32 dim 1 : vector<2x128xf32>, i32 -> vector<2x128xf32>
    %43 = arith.mulf %40, %22 : vector<2x128xf32>
    %44 = arith.mulf %39, %41 : vector<2x128xf32>
    %45 = arith.addf %43, %44 : vector<2x128xf32>
    %46 = math.tanh %45 : vector<2x128xf32>
    %47 = arith.mulf %42, %46 : vector<2x128xf32>
    %c1_i32 = arith.constant 1 : i32
    %c2_i32_22 = arith.constant 2 : i32
    %48 = arith.muli %c1_i32, %c2_i32_22 : i32
    %49 = tpu.assume_multiple %48, 2 : i32
    %50 = arith.index_cast %49 : i32 to index
    %c0_23 = arith.constant 0 : index
    %51 = vector.load %arg8[%50, %c0_23] : memref<16x128xf32, #tpu.memory_space<vmem>>, vector<2x128xf32>
    %cst_24 = arith.constant dense<0.000000e+00> : vector<2x128xf32>
    %52 = tpu.matmul %47, %19, %cst_24 {dimension_numbers = #tpu.dot_dimension_numbers<[1], [0], [0], [1], [0, 0, 1, 1], [], []>} : vector<2x128xf32>, vector<128x128xf32>, vector<2x128xf32> -> vector<2x128xf32>
    %53 = arith.addf %51, %52 : vector<2x128xf32>
    %54 = vector.broadcast %15 : vector<1x128xf32> to vector<2x128xf32>
    %55 = arith.mulf %53, %54 : vector<2x128xf32>
    %56 = arith.negf %55 : vector<2x128xf32>
    %57 = math.exp %56 : vector<2x128xf32>
    %cst_25 = arith.constant 1.000000e+00 : f32
    %58 = vector.broadcast %cst_25 : f32 to vector<2x128xf32>
    %59 = arith.addf %58, %57 : vector<2x128xf32>
    %60 = arith.divf %58, %59 : vector<2x128xf32>
    %61 = vector.broadcast %15 : vector<1x128xf32> to vector<2x128xf32>
    %62 = arith.mulf %60, %61 : vector<2x128xf32>
    %63 = vector.broadcast %18 : vector<1x128xf32> to vector<2x128xf32>
    %64 = arith.addf %62, %63 : vector<2x128xf32>
    %c96_i32_26 = arith.constant 96 : i32
    %65 = tpu.dynamic_rotate %64 by %c96_i32_26 dim 1 : vector<2x128xf32>, i32 -> vector<2x128xf32>
    %c64_i32_27 = arith.constant 64 : i32
    %66 = tpu.dynamic_rotate %64 by %c64_i32_27 dim 1 : vector<2x128xf32>, i32 -> vector<2x128xf32>
    %c32_i32_28 = arith.constant 32 : i32
    %67 = tpu.dynamic_rotate %64 by %c32_i32_28 dim 1 : vector<2x128xf32>, i32 -> vector<2x128xf32>
    %68 = arith.mulf %65, %45 : vector<2x128xf32>
    %69 = arith.mulf %64, %66 : vector<2x128xf32>
    %70 = arith.addf %68, %69 : vector<2x128xf32>
    %71 = math.tanh %70 : vector<2x128xf32>
    %72 = arith.mulf %67, %71 : vector<2x128xf32>
    %c2_i32_29 = arith.constant 2 : i32
    %c2_i32_30 = arith.constant 2 : i32
    %73 = arith.muli %c2_i32_29, %c2_i32_30 : i32
    %74 = tpu.assume_multiple %73, 2 : i32
    %75 = arith.index_cast %74 : i32 to index
    %c0_31 = arith.constant 0 : index
    %76 = vector.load %arg8[%75, %c0_31] : memref<16x128xf32, #tpu.memory_space<vmem>>, vector<2x128xf32>
    %cst_32 = arith.constant dense<0.000000e+00> : vector<2x128xf32>
    %77 = tpu.matmul %72, %19, %cst_32 {dimension_numbers = #tpu.dot_dimension_numbers<[1], [0], [0], [1], [0, 0, 1, 1], [], []>} : vector<2x128xf32>, vector<128x128xf32>, vector<2x128xf32> -> vector<2x128xf32>
    %78 = arith.addf %76, %77 : vector<2x128xf32>
    %79 = vector.broadcast %15 : vector<1x128xf32> to vector<2x128xf32>
    %80 = arith.mulf %78, %79 : vector<2x128xf32>
    %81 = arith.negf %80 : vector<2x128xf32>
    %82 = math.exp %81 : vector<2x128xf32>
    %cst_33 = arith.constant 1.000000e+00 : f32
    %83 = vector.broadcast %cst_33 : f32 to vector<2x128xf32>
    %84 = arith.addf %83, %82 : vector<2x128xf32>
    %85 = arith.divf %83, %84 : vector<2x128xf32>
    %86 = vector.broadcast %15 : vector<1x128xf32> to vector<2x128xf32>
    %87 = arith.mulf %85, %86 : vector<2x128xf32>
    %88 = vector.broadcast %18 : vector<1x128xf32> to vector<2x128xf32>
    %89 = arith.addf %87, %88 : vector<2x128xf32>
    %c96_i32_34 = arith.constant 96 : i32
    %90 = tpu.dynamic_rotate %89 by %c96_i32_34 dim 1 : vector<2x128xf32>, i32 -> vector<2x128xf32>
    %c64_i32_35 = arith.constant 64 : i32
    %91 = tpu.dynamic_rotate %89 by %c64_i32_35 dim 1 : vector<2x128xf32>, i32 -> vector<2x128xf32>
    %c32_i32_36 = arith.constant 32 : i32
    %92 = tpu.dynamic_rotate %89 by %c32_i32_36 dim 1 : vector<2x128xf32>, i32 -> vector<2x128xf32>
    %93 = arith.mulf %90, %70 : vector<2x128xf32>
    %94 = arith.mulf %89, %91 : vector<2x128xf32>
    %95 = arith.addf %93, %94 : vector<2x128xf32>
    %96 = math.tanh %95 : vector<2x128xf32>
    %97 = arith.mulf %92, %96 : vector<2x128xf32>
    %c3_i32 = arith.constant 3 : i32
    %c2_i32_37 = arith.constant 2 : i32
    %98 = arith.muli %c3_i32, %c2_i32_37 : i32
    %99 = tpu.assume_multiple %98, 2 : i32
    %100 = arith.index_cast %99 : i32 to index
    %c0_38 = arith.constant 0 : index
    %101 = vector.load %arg8[%100, %c0_38] : memref<16x128xf32, #tpu.memory_space<vmem>>, vector<2x128xf32>
    %cst_39 = arith.constant dense<0.000000e+00> : vector<2x128xf32>
    %102 = tpu.matmul %97, %19, %cst_39 {dimension_numbers = #tpu.dot_dimension_numbers<[1], [0], [0], [1], [0, 0, 1, 1], [], []>} : vector<2x128xf32>, vector<128x128xf32>, vector<2x128xf32> -> vector<2x128xf32>
    %103 = arith.addf %101, %102 : vector<2x128xf32>
    %104 = vector.broadcast %15 : vector<1x128xf32> to vector<2x128xf32>
    %105 = arith.mulf %103, %104 : vector<2x128xf32>
    %106 = arith.negf %105 : vector<2x128xf32>
    %107 = math.exp %106 : vector<2x128xf32>
    %cst_40 = arith.constant 1.000000e+00 : f32
    %108 = vector.broadcast %cst_40 : f32 to vector<2x128xf32>
    %109 = arith.addf %108, %107 : vector<2x128xf32>
    %110 = arith.divf %108, %109 : vector<2x128xf32>
    %111 = vector.broadcast %15 : vector<1x128xf32> to vector<2x128xf32>
    %112 = arith.mulf %110, %111 : vector<2x128xf32>
    %113 = vector.broadcast %18 : vector<1x128xf32> to vector<2x128xf32>
    %114 = arith.addf %112, %113 : vector<2x128xf32>
    %c96_i32_41 = arith.constant 96 : i32
    %115 = tpu.dynamic_rotate %114 by %c96_i32_41 dim 1 : vector<2x128xf32>, i32 -> vector<2x128xf32>
    %c64_i32_42 = arith.constant 64 : i32
    %116 = tpu.dynamic_rotate %114 by %c64_i32_42 dim 1 : vector<2x128xf32>, i32 -> vector<2x128xf32>
    %c32_i32_43 = arith.constant 32 : i32
    %117 = tpu.dynamic_rotate %114 by %c32_i32_43 dim 1 : vector<2x128xf32>, i32 -> vector<2x128xf32>
    %118 = arith.mulf %115, %95 : vector<2x128xf32>
    %119 = arith.mulf %114, %116 : vector<2x128xf32>
    %120 = arith.addf %118, %119 : vector<2x128xf32>
    %121 = math.tanh %120 : vector<2x128xf32>
    %122 = arith.mulf %117, %121 : vector<2x128xf32>
    %c4_i32 = arith.constant 4 : i32
    %c2_i32_44 = arith.constant 2 : i32
    %123 = arith.muli %c4_i32, %c2_i32_44 : i32
    %124 = tpu.assume_multiple %123, 2 : i32
    %125 = arith.index_cast %124 : i32 to index
    %c0_45 = arith.constant 0 : index
    %126 = vector.load %arg8[%125, %c0_45] : memref<16x128xf32, #tpu.memory_space<vmem>>, vector<2x128xf32>
    %cst_46 = arith.constant dense<0.000000e+00> : vector<2x128xf32>
    %127 = tpu.matmul %122, %19, %cst_46 {dimension_numbers = #tpu.dot_dimension_numbers<[1], [0], [0], [1], [0, 0, 1, 1], [], []>} : vector<2x128xf32>, vector<128x128xf32>, vector<2x128xf32> -> vector<2x128xf32>
    %128 = arith.addf %126, %127 : vector<2x128xf32>
    %129 = vector.broadcast %15 : vector<1x128xf32> to vector<2x128xf32>
    %130 = arith.mulf %128, %129 : vector<2x128xf32>
    %131 = arith.negf %130 : vector<2x128xf32>
    %132 = math.exp %131 : vector<2x128xf32>
    %cst_47 = arith.constant 1.000000e+00 : f32
    %133 = vector.broadcast %cst_47 : f32 to vector<2x128xf32>
    %134 = arith.addf %133, %132 : vector<2x128xf32>
    %135 = arith.divf %133, %134 : vector<2x128xf32>
    %136 = vector.broadcast %15 : vector<1x128xf32> to vector<2x128xf32>
    %137 = arith.mulf %135, %136 : vector<2x128xf32>
    %138 = vector.broadcast %18 : vector<1x128xf32> to vector<2x128xf32>
    %139 = arith.addf %137, %138 : vector<2x128xf32>
    %c96_i32_48 = arith.constant 96 : i32
    %140 = tpu.dynamic_rotate %139 by %c96_i32_48 dim 1 : vector<2x128xf32>, i32 -> vector<2x128xf32>
    %c64_i32_49 = arith.constant 64 : i32
    %141 = tpu.dynamic_rotate %139 by %c64_i32_49 dim 1 : vector<2x128xf32>, i32 -> vector<2x128xf32>
    %c32_i32_50 = arith.constant 32 : i32
    %142 = tpu.dynamic_rotate %139 by %c32_i32_50 dim 1 : vector<2x128xf32>, i32 -> vector<2x128xf32>
    %143 = arith.mulf %140, %120 : vector<2x128xf32>
    %144 = arith.mulf %139, %141 : vector<2x128xf32>
    %145 = arith.addf %143, %144 : vector<2x128xf32>
    %146 = math.tanh %145 : vector<2x128xf32>
    %147 = arith.mulf %142, %146 : vector<2x128xf32>
    %c5_i32 = arith.constant 5 : i32
    %c2_i32_51 = arith.constant 2 : i32
    %148 = arith.muli %c5_i32, %c2_i32_51 : i32
    %149 = tpu.assume_multiple %148, 2 : i32
    %150 = arith.index_cast %149 : i32 to index
    %c0_52 = arith.constant 0 : index
    %151 = vector.load %arg8[%150, %c0_52] : memref<16x128xf32, #tpu.memory_space<vmem>>, vector<2x128xf32>
    %cst_53 = arith.constant dense<0.000000e+00> : vector<2x128xf32>
    %152 = tpu.matmul %147, %19, %cst_53 {dimension_numbers = #tpu.dot_dimension_numbers<[1], [0], [0], [1], [0, 0, 1, 1], [], []>} : vector<2x128xf32>, vector<128x128xf32>, vector<2x128xf32> -> vector<2x128xf32>
    %153 = arith.addf %151, %152 : vector<2x128xf32>
    %154 = vector.broadcast %15 : vector<1x128xf32> to vector<2x128xf32>
    %155 = arith.mulf %153, %154 : vector<2x128xf32>
    %156 = arith.negf %155 : vector<2x128xf32>
    %157 = math.exp %156 : vector<2x128xf32>
    %cst_54 = arith.constant 1.000000e+00 : f32
    %158 = vector.broadcast %cst_54 : f32 to vector<2x128xf32>
    %159 = arith.addf %158, %157 : vector<2x128xf32>
    %160 = arith.divf %158, %159 : vector<2x128xf32>
    %161 = vector.broadcast %15 : vector<1x128xf32> to vector<2x128xf32>
    %162 = arith.mulf %160, %161 : vector<2x128xf32>
    %163 = vector.broadcast %18 : vector<1x128xf32> to vector<2x128xf32>
    %164 = arith.addf %162, %163 : vector<2x128xf32>
    %c96_i32_55 = arith.constant 96 : i32
    %165 = tpu.dynamic_rotate %164 by %c96_i32_55 dim 1 : vector<2x128xf32>, i32 -> vector<2x128xf32>
    %c64_i32_56 = arith.constant 64 : i32
    %166 = tpu.dynamic_rotate %164 by %c64_i32_56 dim 1 : vector<2x128xf32>, i32 -> vector<2x128xf32>
    %c32_i32_57 = arith.constant 32 : i32
    %167 = tpu.dynamic_rotate %164 by %c32_i32_57 dim 1 : vector<2x128xf32>, i32 -> vector<2x128xf32>
    %168 = arith.mulf %165, %145 : vector<2x128xf32>
    %169 = arith.mulf %164, %166 : vector<2x128xf32>
    %170 = arith.addf %168, %169 : vector<2x128xf32>
    %171 = math.tanh %170 : vector<2x128xf32>
    %172 = arith.mulf %167, %171 : vector<2x128xf32>
    %c6_i32 = arith.constant 6 : i32
    %c2_i32_58 = arith.constant 2 : i32
    %173 = arith.muli %c6_i32, %c2_i32_58 : i32
    %174 = tpu.assume_multiple %173, 2 : i32
    %175 = arith.index_cast %174 : i32 to index
    %c0_59 = arith.constant 0 : index
    %176 = vector.load %arg8[%175, %c0_59] : memref<16x128xf32, #tpu.memory_space<vmem>>, vector<2x128xf32>
    %cst_60 = arith.constant dense<0.000000e+00> : vector<2x128xf32>
    %177 = tpu.matmul %172, %19, %cst_60 {dimension_numbers = #tpu.dot_dimension_numbers<[1], [0], [0], [1], [0, 0, 1, 1], [], []>} : vector<2x128xf32>, vector<128x128xf32>, vector<2x128xf32> -> vector<2x128xf32>
    %178 = arith.addf %176, %177 : vector<2x128xf32>
    %179 = vector.broadcast %15 : vector<1x128xf32> to vector<2x128xf32>
    %180 = arith.mulf %178, %179 : vector<2x128xf32>
    %181 = arith.negf %180 : vector<2x128xf32>
    %182 = math.exp %181 : vector<2x128xf32>
    %cst_61 = arith.constant 1.000000e+00 : f32
    %183 = vector.broadcast %cst_61 : f32 to vector<2x128xf32>
    %184 = arith.addf %183, %182 : vector<2x128xf32>
    %185 = arith.divf %183, %184 : vector<2x128xf32>
    %186 = vector.broadcast %15 : vector<1x128xf32> to vector<2x128xf32>
    %187 = arith.mulf %185, %186 : vector<2x128xf32>
    %188 = vector.broadcast %18 : vector<1x128xf32> to vector<2x128xf32>
    %189 = arith.addf %187, %188 : vector<2x128xf32>
    %c96_i32_62 = arith.constant 96 : i32
    %190 = tpu.dynamic_rotate %189 by %c96_i32_62 dim 1 : vector<2x128xf32>, i32 -> vector<2x128xf32>
    %c64_i32_63 = arith.constant 64 : i32
    %191 = tpu.dynamic_rotate %189 by %c64_i32_63 dim 1 : vector<2x128xf32>, i32 -> vector<2x128xf32>
    %c32_i32_64 = arith.constant 32 : i32
    %192 = tpu.dynamic_rotate %189 by %c32_i32_64 dim 1 : vector<2x128xf32>, i32 -> vector<2x128xf32>
    %193 = arith.mulf %190, %170 : vector<2x128xf32>
    %194 = arith.mulf %189, %191 : vector<2x128xf32>
    %195 = arith.addf %193, %194 : vector<2x128xf32>
    %196 = math.tanh %195 : vector<2x128xf32>
    %197 = arith.mulf %192, %196 : vector<2x128xf32>
    %c7_i32 = arith.constant 7 : i32
    %c2_i32_65 = arith.constant 2 : i32
    %198 = arith.muli %c7_i32, %c2_i32_65 : i32
    %199 = tpu.assume_multiple %198, 2 : i32
    %200 = arith.index_cast %199 : i32 to index
    %c0_66 = arith.constant 0 : index
    %201 = vector.load %arg8[%200, %c0_66] : memref<16x128xf32, #tpu.memory_space<vmem>>, vector<2x128xf32>
    %cst_67 = arith.constant dense<0.000000e+00> : vector<2x128xf32>
    %202 = tpu.matmul %197, %19, %cst_67 {dimension_numbers = #tpu.dot_dimension_numbers<[1], [0], [0], [1], [0, 0, 1, 1], [], []>} : vector<2x128xf32>, vector<128x128xf32>, vector<2x128xf32> -> vector<2x128xf32>
    %203 = arith.addf %201, %202 : vector<2x128xf32>
    %204 = vector.broadcast %15 : vector<1x128xf32> to vector<2x128xf32>
    %205 = arith.mulf %203, %204 : vector<2x128xf32>
    %206 = arith.negf %205 : vector<2x128xf32>
    %207 = math.exp %206 : vector<2x128xf32>
    %cst_68 = arith.constant 1.000000e+00 : f32
    %208 = vector.broadcast %cst_68 : f32 to vector<2x128xf32>
    %209 = arith.addf %208, %207 : vector<2x128xf32>
    %210 = arith.divf %208, %209 : vector<2x128xf32>
    %211 = vector.broadcast %15 : vector<1x128xf32> to vector<2x128xf32>
    %212 = arith.mulf %210, %211 : vector<2x128xf32>
    %213 = vector.broadcast %18 : vector<1x128xf32> to vector<2x128xf32>
    %214 = arith.addf %212, %213 : vector<2x128xf32>
    %c96_i32_69 = arith.constant 96 : i32
    %215 = tpu.dynamic_rotate %214 by %c96_i32_69 dim 1 : vector<2x128xf32>, i32 -> vector<2x128xf32>
    %c64_i32_70 = arith.constant 64 : i32
    %216 = tpu.dynamic_rotate %214 by %c64_i32_70 dim 1 : vector<2x128xf32>, i32 -> vector<2x128xf32>
    %c32_i32_71 = arith.constant 32 : i32
    %217 = tpu.dynamic_rotate %214 by %c32_i32_71 dim 1 : vector<2x128xf32>, i32 -> vector<2x128xf32>
    %218 = arith.mulf %215, %195 : vector<2x128xf32>
    %219 = arith.mulf %214, %216 : vector<2x128xf32>
    %220 = arith.addf %218, %219 : vector<2x128xf32>
    %221 = math.tanh %220 : vector<2x128xf32>
    %222 = arith.mulf %217, %221 : vector<2x128xf32>
    %c8_i32 = arith.constant 8 : i32
    %223 = vector.broadcast %20 : vector<1x128xf32> to vector<2x128xf32>
    %224 = arith.mulf %222, %223 : vector<2x128xf32>
    %cst_72 = arith.constant dense<0.000000e+00> : vector<2xf32>
    %225 = vector.multi_reduction <add>, %224, %cst_72 [1] : vector<2x128xf32> to vector<2xf32>
    %226 = vector.shape_cast %225 : vector<2xf32> to vector<2x1xf32>
    %c0_73 = arith.constant 0 : index
    %c0_74 = arith.constant 0 : index
    %227 = vector.load %arg6[%c0_73, %c0_74] : memref<1x1xf32, #tpu.memory_space<vmem>>, vector<1x1xf32>
    %228 = vector.broadcast %227 : vector<1x1xf32> to vector<2x1xf32>
    %229 = arith.addf %226, %228 : vector<2x1xf32>
    %c0_75 = arith.constant 0 : index
    %c0_76 = arith.constant 0 : index
    %230 = vector.load %arg7[%c0_75, %c0_76] : memref<2x1xf32, #tpu.memory_space<vmem>>, vector<2x1xf32>
    tpu.vector_store %arg7[%c0_75, %c0_76], %229 {strides = array<i32>} : memref<2x1xf32, #tpu.memory_space<vmem>>, vector<2x1xf32>,
    return
  }
  func.func @transform_0(%arg0: i32) -> (i32, i32) {
    %c0_i32 = arith.constant 0 : i32
    %c0_i32_0 = arith.constant 0 : i32
    %c0_i32_1 = arith.constant 0 : i32
    return %c0_i32, %c0_i32_0 : i32, i32
  }
  func.func @transform_1(%arg0: i32) -> (i32, i32) {
    %c0_i32 = arith.constant 0 : i32
    %c0_i32_0 = arith.constant 0 : i32
    %c0_i32_1 = arith.constant 0 : i32
    return %c0_i32, %c0_i32_0 : i32, i32
  }
  func.func @transform_2(%arg0: i32) -> (i32, i32) {
    %c0_i32 = arith.constant 0 : i32
    %c0_i32_0 = arith.constant 0 : i32
    %c0_i32_1 = arith.constant 0 : i32
    return %c0_i32, %c0_i32_0 : i32, i32
  }
  func.func @transform_3(%arg0: i32) -> (i32, i32) {
    %c0_i32 = arith.constant 0 : i32
    %c0_i32_0 = arith.constant 0 : i32
    %c0_i32_1 = arith.constant 0 : i32
    return %c0_i32, %c0_i32_0 : i32, i32
  }
  func.func @transform_4(%arg0: i32) -> (i32, i32) {
    %c0_i32 = arith.constant 0 : i32
    %c0_i32_0 = arith.constant 0 : i32
    %c0_i32_1 = arith.constant 0 : i32
    return %c0_i32, %c0_i32_0 : i32, i32
  }
  func.func @transform_5(%arg0: i32) -> (i32, i32) {
    %c0_i32 = arith.constant 0 : i32
    %c0_i32_0 = arith.constant 0 : i32
    %c0_i32_1 = arith.constant 0 : i32
    return %c0_i32, %c0_i32_0 : i32, i32
  }
  func.func @transform_6(%arg0: i32) -> (i32, i32) {
    %c0_i32 = arith.constant 0 : i32
    %c0_i32_0 = arith.constant 0 : i32
    %c0_i32_1 = arith.constant 0 : i32
    return %c0_i32, %c0_i32_0 : i32, i32
  }
}

</mosaic_0001>

<llo_original>
// kernel: tpu_custom_call.1
$region0: #{tpu_custom_call.1}
  #allocation0 [shape = 'u32[]', space=smem, size = 0x4, offset = 0x4, fixed_abs, tag = 'smem constant byte address 0x4 - core index']
  #allocation1 [shape = 'u32[144,128]{1,0:T(1,128)}', space=vmem, size = 0x12000, scoped, tag = 'internal scratch']
  #allocation2 [shape = 'f32[16,128]{1,0:T(8,128)}', space=vmem, size = 0x2000, scoped, tag = 'scratch operand']
  #allocation3 [shape = 'f32[1,1]{1,0:T(1,128)S(1)}', space=vmem, size = 0x200, scoped, tag = 'scoped memory for tpu_custom_call.1']
  %s0 = inlined_call_operand.vmem [shape: f32[16,4], index: 0, kind: input, shape index: {}]
  %s1 = inlined_call_operand.vmem [shape: f32[4,128], index: 1, kind: input, shape index: {}]
  %s2 = inlined_call_operand.hbm [shape: f32[128,128], index: 2, kind: input, shape index: {}]
  %s3 = inlined_call_operand.vmem [shape: f32[1,128], index: 3, kind: input, shape index: {}]
  %s4 = inlined_call_operand.vmem [shape: f32[1,128], index: 4, kind: input, shape index: {}]
  %s5 = inlined_call_operand.<no memory space> [shape: f32[1,1], index: 5, kind: input, shape index: {}]
  %s6 = inlined_call_operand.vmem [shape: f32[2,1], index: 6, kind: output, shape index: {}]
  %s7 = sld [smem:[#allocation0]]
  $region38: #{tpu_custom_call.1} parent=0
    _
  %s9 = ssub.s32 1, %s7
  %s10 = scalar_select 0, %s9, %s7
  %v11 = vstv %s5
  %12 = vst [vmem:[#allocation3] sm:$0x1] %v11
  $region1: #{tpu_custom_call.1} parent=0
    #allocation4 [shape = 'u8[65536]{0}', space=vmem, size = 0x10000, scoped, tag = 'input window, operand 2, single buffered']
    #allocation5 [shape = 's32[1]{0}', space=sflag, size = 0x4, scoped, tag = 'scoped memory for tpu_custom_call.1']
    %13 = vsyncpa [#allocation5], 0
    // Predicated region
    $region2: #{tpu_custom_call.1} parent=1 // pred_check
      _
    $region3: #{tpu_custom_call.1} parent=1 // pred_check_branch
      %15 = sbr.rel (0) target = $region5
    $region4: #{tpu_custom_call.1} parent=1 // pred_region
      _
    $region5: #{tpu_custom_call.1} parent=1 // pred_fallthru
      _
    // Predicated region
    $region6: #{tpu_custom_call.1} parent=1 // pred_check
      _
    $region7: #{tpu_custom_call.1} parent=1 // pred_check_branch
      %17 = sbr.rel (0) target = $region9
    $region8: #{tpu_custom_call.1} parent=1 // pred_region
      _
    $region9: #{tpu_custom_call.1} parent=1 // pred_fallthru
      _
    // Predicated region
    $region10: #{tpu_custom_call.1} parent=1 // pred_check
      _
    $region11: #{tpu_custom_call.1} parent=1 // pred_check_branch
      %19 = sbr.rel (0) target = $region13
    $region12: #{tpu_custom_call.1} parent=1 // pred_region
      %s21 = ssub.s32 2048, 2048
      %22 = vsyncadd [#allocation5], %s21
      %s23 = sshll.u32 [#allocation4], 4
      %s24 = int_to_ptr.vmem [resolvable:$true] %s23
      %29 = dma.hbm_to_vmem [thread:$0]  %s2, 2048, %s24, [#allocation5], 128, 128, 8
    $region13: #{tpu_custom_call.1} parent=1 // pred_fallthru
      _
    // Predicated region
    $region14: #{tpu_custom_call.1} parent=1 // pred_check
      _
    $region15: #{tpu_custom_call.1} parent=1 // pred_check_branch
      %31 = sbr.rel (0) target = $region17
    $region16: #{tpu_custom_call.1} parent=1 // pred_region
      _
    $region17: #{tpu_custom_call.1} parent=1 // pred_fallthru
      _
    // Predicated region
    $region18: #{tpu_custom_call.1} parent=1 // pred_check
      _
    $region19: #{tpu_custom_call.1} parent=1 // pred_check_branch
      %33 = sbr.rel (0) target = $region21
    $region20: #{tpu_custom_call.1} parent=1 // pred_region
      _
    $region21: #{tpu_custom_call.1} parent=1 // pred_fallthru
      _
    // Predicated region
    $region22: #{tpu_custom_call.1} parent=1 // pred_check
      _
    $region23: #{tpu_custom_call.1} parent=1 // pred_check_branch
      %35 = sbr.rel (0) target = $region25
    $region24: #{tpu_custom_call.1} parent=1 // pred_region
      _
    $region25: #{tpu_custom_call.1} parent=1 // pred_fallthru
      _
    // Predicated region
    $region26: #{tpu_custom_call.1} parent=1 // pred_check
      _
    $region27: #{tpu_custom_call.1} parent=1 // pred_check_branch
      %37 = sbr.rel (0) target = $region29
    $region28: #{tpu_custom_call.1} parent=1 // pred_region
      %38 = dma.done [#allocation5], 2048
    $region29: #{tpu_custom_call.1} parent=1 // pred_fallthru
      _
    %v39 = vld [vmem:[%s0] sm:$0xff]
    %v40 = vld [vmem:[%s0 + $0x8] sm:$0xff]
    %v41 = vld [vmem:[%s1] sm:$0xf]
    %v42 = vld [vmem:[%s3] sm:$0x1]
    %v44 = vlaneseq
    %v45 = vshrl.u32 %v44, 7
    %v46 = vsub.s32 0, %v45
    %v47 = vrot.slane %v42, %v46
    %vm49 = vcmask 31744
    %v51 = vsel %vm49, %v39, 0
    %v54 = vsel %vm49, %v40, 0
    %vm56 = vcmask 1043456
    %v58 = vsel %vm56, %v41, 0
    %60 = vmatprep.subr.mxu0 0.0
    %61 = vmatpush1.msra.mxu0 %v58
    %62 = vmatprep.subr.mxu0 0.0
    %63 = vmatpush1.msra.mxu0 0.0
    %64 = vmatprep.subr.mxu0 0.0
    %65 = vmatpush1.msra.mxu0 0.0
    %66 = vmatprep.subr.mxu0 0.0
    %67 = vmatpush1.msra.mxu0 0.0
    %68 = vmatprep.subr.mxu0 0.0
    %69 = vmatpush1.msra.mxu0 0.0
    %70 = vmatprep.subr.mxu0 0.0
    %71 = vmatpush1.msra.mxu0 0.0
    %72 = vmatprep.subr.mxu0 0.0
    %73 = vmatpush1.msra.mxu0 0.0
    %74 = vmatprep.subr.mxu0 0.0
    %75 = vmatpush1.msra.mxu0 0.0
    %76 = vmatprep.subr.mxu0 0.0
    %77 = vmatpush1.msra.mxu0 0.0
    %78 = vmatprep.subr.mxu0 0.0
    %79 = vmatpush1.msra.mxu0 0.0
    %80 = vmatprep.subr.mxu0 0.0
    %81 = vmatpush1.msra.mxu0 0.0
    %82 = vmatprep.subr.mxu0 0.0
    %83 = vmatpush1.msra.mxu0 0.0
    %84 = vmatprep.subr.mxu0 0.0
    %85 = vmatpush1.msra.mxu0 0.0
    %86 = vmatprep.subr.mxu0 0.0
    %87 = vmatpush1.msra.mxu0 0.0
    %88 = vmatprep.subr.mxu0 0.0
    %89 = vmatpush1.msra.mxu0 0.0
    %90 = vmatprep.subr.mxu0 0.0
    %91 = vmatpush1.msra.mxu0 0.0
    %92 = vmatprep.subr.mxu0 0.0
    %93 = vmatpush1.msra.mxu0 0.0
    %94 = vmatprep.subr.mxu0 0.0
    %95 = vmatpush1.msra.mxu0 0.0
    %96 = vmatprep.subr.mxu0 0.0
    %97 = vmatpush1.msra.mxu0 0.0
    %98 = vmatprep.subr.mxu0 0.0
    %99 = vmatpush1.msra.mxu0 0.0
    %100 = vmatprep.subr.mxu0 0.0
    %101 = vmatpush1.msra.mxu0 0.0
    %102 = vmatprep.subr.mxu0 0.0
    %103 = vmatpush1.msra.mxu0 0.0
    %104 = vmatprep.subr.mxu0 0.0
    %105 = vmatpush1.msra.mxu0 0.0
    %106 = vmatprep.subr.mxu0 0.0
    %107 = vmatpush1.msra.mxu0 0.0
    %108 = vmatprep.subr.mxu0 0.0
    %109 = vmatpush1.msra.mxu0 0.0
    %110 = vmatprep.subr.mxu0 0.0
    %111 = vmatpush1.msra.mxu0 0.0
    %112 = vmatprep.subr.mxu0 0.0
    %113 = vmatpush1.msra.mxu0 0.0
    %114 = vmatprep.subr.mxu0 0.0
    %115 = vmatpush1.msra.mxu0 0.0
    %116 = vmatprep.subr.mxu0 0.0
    %117 = vmatpush1.msra.mxu0 0.0
    %118 = vmatprep.subr.mxu0 0.0
    %119 = vmatpush1.msra.mxu0 0.0
    %120 = vmatprep.subr.mxu0 0.0
    %121 = vmatpush1.msra.mxu0 0.0
    %122 = vmatprep.subr.mxu0 0.0
    %123 = vmatpush1.msra.mxu0 0.0
    %124 = vmatprep.mubr.f32.mxu0 0.0
    %125 = vmatmul.mubr.f32.gmra.mrb[0].mxu0 %v51
    %v126 = vpop.f32.mrb[0].mxu0
    %v127 = vadd.f32 %v47, %v126
    %v128 = vpop.f32.mrb[0].mxu0
    %129 = vmatprep.mubr.f32.mxu0 0.0
    %130 = vmatmul.mubr.f32.gmra.mrb[0].mxu0 %v54
    %v131 = vpop.f32.mrb[0].mxu0
    %v132 = vadd.f32 %v47, %v131
    %v133 = vpop.f32.mrb[0].mxu0
    %134 = vdwg.mxu0
    %135 = vst [vmem:[#allocation2] sm:$0xff] %v127
    %136 = vst [vmem:[#allocation2 + $0x8] sm:$0xff] %v132
    %v137 = vlaneseq
    %v138 = vand.u32 %v137, 127
    %vm139 = vcmp.ge.s32.totalorder %v138, 64
    %vm140 = vcmp.lt.s32.totalorder %v138, 96
    %vm141 = vmand %vm139, %vm140
    %v142 = vsel %vm141, 2.0, 1.0
    %v143 = vsel %vm141, -1.0, 0.0
    %v144 = vld [vmem:[#allocation4] sm:$0xff]
    %v145 = vld [vmem:[#allocation4 + $0x8] sm:$0xff]
    %v146 = vld [vmem:[#allocation4 + $0x10] sm:$0xff]
    %v147 = vld [vmem:[#allocation4 + $0x18] sm:$0xff]
    %v148 = vld [vmem:[#allocation4 + $0x20] sm:$0xff]
    %v149 = vld [vmem:[#allocation4 + $0x28] sm:$0xff]
    %v150 = vld [vmem:[#allocation4 + $0x30] sm:$0xff]
    %v151 = vld [vmem:[#allocation4 + $0x38] sm:$0xff]
    %v152 = vld [vmem:[#allocation4 + $0x40] sm:$0xff]
    %v153 = vld [vmem:[#allocation4 + $0x48] sm:$0xff]
    %v154 = vld [vmem:[#allocation4 + $0x50] sm:$0xff]
    %v155 = vld [vmem:[#allocation4 + $0x58] sm:$0xff]
    %v156 = vld [vmem:[#allocation4 + $0x60] sm:$0xff]
    %v157 = vld [vmem:[#allocation4 + $0x68] sm:$0xff]
    %v158 = vld [vmem:[#allocation4 + $0x70] sm:$0xff]
    %v159 = vld [vmem:[#allocation4 + $0x78] sm:$0xff]
    %v160 = vld [vmem:[%s4] sm:$0x1]
    %v161 = vld [vmem:[#allocation2] sm:$0x3]
    %162 = vmatprep.subr.mxu0 0.0
    %163 = vmatpush1.msra.mxu0 %v144
    %164 = vmatprep.subr.mxu0 0.0
    %165 = vmatpush1.msra.mxu0 %v145
    %166 = vmatprep.subr.mxu0 0.0
    %167 = vmatpush1.msra.mxu0 %v146
    %168 = vmatprep.subr.mxu0 0.0
    %169 = vmatpush1.msra.mxu0 %v147
    %170 = vmatprep.subr.mxu0 0.0
    %171 = vmatpush1.msra.mxu0 %v148
    %172 = vmatprep.subr.mxu0 0.0
    %173 = vmatpush1.msra.mxu0 %v149
    %174 = vmatprep.subr.mxu0 0.0
    %175 = vmatpush1.msra.mxu0 %v150
    %176 = vmatprep.subr.mxu0 0.0
    %177 = vmatpush1.msra.mxu0 %v151
    %178 = vmatprep.subr.mxu0 0.0
    %179 = vmatpush1.msra.mxu0 %v152
    %180 = vmatprep.subr.mxu0 0.0
    %181 = vmatpush1.msra.mxu0 %v153
    %182 = vmatprep.subr.mxu0 0.0
    %183 = vmatpush1.msra.mxu0 %v154
    %184 = vmatprep.subr.mxu0 0.0
    %185 = vmatpush1.msra.mxu0 %v155
    %186 = vmatprep.subr.mxu0 0.0
    %187 = vmatpush1.msra.mxu0 %v156
    %188 = vmatprep.subr.mxu0 0.0
    %189 = vmatpush1.msra.mxu0 %v157
    %190 = vmatprep.subr.mxu0 0.0
    %191 = vmatpush1.msra.mxu0 %v158
    %192 = vmatprep.subr.mxu0 0.0
    %193 = vmatpush1.msra.mxu0 %v159
    %194 = vmatprep.subr.mxu0 0.0
    %195 = vmatpush1.msra.mxu0 0.0
    %196 = vmatprep.subr.mxu0 0.0
    %197 = vmatpush1.msra.mxu0 0.0
    %198 = vmatprep.subr.mxu0 0.0
    %199 = vmatpush1.msra.mxu0 0.0
    %200 = vmatprep.subr.mxu0 0.0
    %201 = vmatpush1.msra.mxu0 0.0
    %202 = vmatprep.subr.mxu0 0.0
    %203 = vmatpush1.msra.mxu0 0.0
    %204 = vmatprep.subr.mxu0 0.0
    %205 = vmatpush1.msra.mxu0 0.0
    %206 = vmatprep.subr.mxu0 0.0
    %207 = vmatpush1.msra.mxu0 0.0
    %208 = vmatprep.subr.mxu0 0.0
    %209 = vmatpush1.msra.mxu0 0.0
    %210 = vmatprep.subr.mxu0 0.0
    %211 = vmatpush1.msra.mxu0 0.0
    %212 = vmatprep.subr.mxu0 0.0
    %213 = vmatpush1.msra.mxu0 0.0
    %214 = vmatprep.subr.mxu0 0.0
    %215 = vmatpush1.msra.mxu0 0.0
    %216 = vmatprep.subr.mxu0 0.0
    %217 = vmatpush1.msra.mxu0 0.0
    %218 = vmatprep.subr.mxu0 0.0
    %219 = vmatpush1.msra.mxu0 0.0
    %220 = vmatprep.subr.mxu0 0.0
    %221 = vmatpush1.msra.mxu0 0.0
    %222 = vmatprep.subr.mxu0 0.0
    %223 = vmatpush1.msra.mxu0 0.0
    %224 = vmatprep.subr.mxu0 0.0
    %225 = vmatpush1.msra.mxu0 0.0
    %226 = vmatprep.mubr.f32.mxu0 0.0
    %227 = vmatmul.mubr.f32.gmra.mrb[0].mxu0 0.0
    %v228 = vpop.f32.mrb[0].mxu0
    %v229 = vadd.f32 0.0, %v228
    %v230 = vpop.f32.mrb[0].mxu0
    %231 = vdwg.mxu0
    %v232 = vadd.f32 %v161, %v229
    %v233 = vmul.f32 %v232, %v142
    %v234 = vxor.u32 %v233, 2147483648
    %v235 = vmul.f32 %v234, 1.442695
    %v236 = vpow.pop %v235
    %v237 = vadd.f32 %v236, 1.0
    %v238 = vrcp.pop %v237
    %v239 = vmul.f32 1.0, %v238
    %v240 = vmul.f32 %v239, %v142
    %v241 = vadd.f32 %v240, %v143
    %242 = vrot.lane.b32.xlu0 %v241, 96
    %v243 = vpop.permute.xlu0 %242
    %244 = vrot.lane.b32.xlu0 %v241, 64
    %v245 = vpop.permute.xlu0 %244
    %246 = vrot.lane.b32.xlu0 %v241, 32
    %v247 = vpop.permute.xlu0 %246
    %v248 = vmul.f32 %v243, 0.0
    %v249 = vmul.f32 %v241, %v245
    %v250 = vadd.f32 %v248, %v249
    %v251 = vtanh.pop %v250
    %v252 = vmul.f32 %v247, %v251
    %s253 = scalar_lea.vmem [#allocation2], 2
    %v254 = vld [vmem:[%s253] sm:$0x3]
    %255 = vmatprep.subr.mxu0 0.0
    %256 = vmatpush1.msra.mxu0 %v144
    %257 = vmatprep.subr.mxu0 0.0
    %258 = vmatpush1.msra.mxu0 %v145
    %259 = vmatprep.subr.mxu0 0.0
    %260 = vmatpush1.msra.mxu0 %v146
    %261 = vmatprep.subr.mxu0 0.0
    %262 = vmatpush1.msra.mxu0 %v147
    %263 = vmatprep.subr.mxu0 0.0
    %264 = vmatpush1.msra.mxu0 %v148
    %265 = vmatprep.subr.mxu0 0.0
    %266 = vmatpush1.msra.mxu0 %v149
    %267 = vmatprep.subr.mxu0 0.0
    %268 = vmatpush1.msra.mxu0 %v150
    %269 = vmatprep.subr.mxu0 0.0
    %270 = vmatpush1.msra.mxu0 %v151
    %271 = vmatprep.subr.mxu0 0.0
    %272 = vmatpush1.msra.mxu0 %v152
    %273 = vmatprep.subr.mxu0 0.0
    %274 = vmatpush1.msra.mxu0 %v153
    %275 = vmatprep.subr.mxu0 0.0
    %276 = vmatpush1.msra.mxu0 %v154
    %277 = vmatprep.subr.mxu0 0.0
    %278 = vmatpush1.msra.mxu0 %v155
    %279 = vmatprep.subr.mxu0 0.0
    %280 = vmatpush1.msra.mxu0 %v156
    %281 = vmatprep.subr.mxu0 0.0
    %282 = vmatpush1.msra.mxu0 %v157
    %283 = vmatprep.subr.mxu0 0.0
    %284 = vmatpush1.msra.mxu0 %v158
    %285 = vmatprep.subr.mxu0 0.0
    %286 = vmatpush1.msra.mxu0 %v159
    %287 = vmatprep.subr.mxu0 0.0
    %288 = vmatpush1.msra.mxu0 0.0
    %289 = vmatprep.subr.mxu0 0.0
    %290 = vmatpush1.msra.mxu0 0.0
    %291 = vmatprep.subr.mxu0 0.0
    %292 = vmatpush1.msra.mxu0 0.0
    %293 = vmatprep.subr.mxu0 0.0
    %294 = vmatpush1.msra.mxu0 0.0
    %295 = vmatprep.subr.mxu0 0.0
    %296 = vmatpush1.msra.mxu0 0.0
    %297 = vmatprep.subr.mxu0 0.0
    %298 = vmatpush1.msra.mxu0 0.0
    %299 = vmatprep.subr.mxu0 0.0
    %300 = vmatpush1.msra.mxu0 0.0
    %301 = vmatprep.subr.mxu0 0.0
    %302 = vmatpush1.msra.mxu0 0.0
    %303 = vmatprep.subr.mxu0 0.0
    %304 = vmatpush1.msra.mxu0 0.0
    %305 = vmatprep.subr.mxu0 0.0
    %306 = vmatpush1.msra.mxu0 0.0
    %307 = vmatprep.subr.mxu0 0.0
    %308 = vmatpush1.msra.mxu0 0.0
    %309 = vmatprep.subr.mxu0 0.0
    %310 = vmatpush1.msra.mxu0 0.0
    %311 = vmatprep.subr.mxu0 0.0
    %312 = vmatpush1.msra.mxu0 0.0
    %313 = vmatprep.subr.mxu0 0.0
    %314 = vmatpush1.msra.mxu0 0.0
    %315 = vmatprep.subr.mxu0 0.0
    %316 = vmatpush1.msra.mxu0 0.0
    %317 = vmatprep.subr.mxu0 0.0
    %318 = vmatpush1.msra.mxu0 0.0
    %319 = vmatprep.mubr.f32.mxu0 0.0
    %320 = vmatmul.mubr.f32.gmra.mrb[0].mxu0 %v252
    %v321 = vpop.f32.mrb[0].mxu0
    %v322 = vadd.f32 0.0, %v321
    %v323 = vpop.f32.mrb[0].mxu0
    %324 = vdwg.mxu0
    %v325 = vadd.f32 %v254, %v322
    %v326 = vmul.f32 %v325, %v142
    %v327 = vxor.u32 %v326, 2147483648
    %v328 = vmul.f32 %v327, 1.442695
    %v329 = vpow.pop %v328
    %v330 = vadd.f32 %v329, 1.0
    %v331 = vrcp.pop %v330
    %v332 = vmul.f32 1.0, %v331
    %v333 = vmul.f32 %v332, %v142
    %v334 = vadd.f32 %v333, %v143
    %335 = vrot.lane.b32.xlu0 %v334, 96
    %v336 = vpop.permute.xlu0 %335
    %337 = vrot.lane.b32.xlu0 %v334, 64
    %v338 = vpop.permute.xlu0 %337
    %339 = vrot.lane.b32.xlu0 %v334, 32
    %v340 = vpop.permute.xlu0 %339
    %v341 = vmul.f32 %v336, %v250
    %v342 = vmul.f32 %v334, %v338
    %v343 = vadd.f32 %v341, %v342
    %v344 = vtanh.pop %v343
    %v345 = vmul.f32 %v340, %v344
    %s346 = scalar_lea.vmem [#allocation2], 4
    %v347 = vld [vmem:[%s346] sm:$0x3]
    %348 = vmatprep.subr.mxu0 0.0
    %349 = vmatpush1.msra.mxu0 %v144
    %350 = vmatprep.subr.mxu0 0.0
    %351 = vmatpush1.msra.mxu0 %v145
    %352 = vmatprep.subr.mxu0 0.0
    %353 = vmatpush1.msra.mxu0 %v146
    %354 = vmatprep.subr.mxu0 0.0
    %355 = vmatpush1.msra.mxu0 %v147
    %356 = vmatprep.subr.mxu0 0.0
    %357 = vmatpush1.msra.mxu0 %v148
    %358 = vmatprep.subr.mxu0 0.0
    %359 = vmatpush1.msra.mxu0 %v149
    %360 = vmatprep.subr.mxu0 0.0
    %361 = vmatpush1.msra.mxu0 %v150
    %362 = vmatprep.subr.mxu0 0.0
    %363 = vmatpush1.msra.mxu0 %v151
    %364 = vmatprep.subr.mxu0 0.0
    %365 = vmatpush1.msra.mxu0 %v152
    %366 = vmatprep.subr.mxu0 0.0
    %367 = vmatpush1.msra.mxu0 %v153
    %368 = vmatprep.subr.mxu0 0.0
    %369 = vmatpush1.msra.mxu0 %v154
    %370 = vmatprep.subr.mxu0 0.0
    %371 = vmatpush1.msra.mxu0 %v155
    %372 = vmatprep.subr.mxu0 0.0
    %373 = vmatpush1.msra.mxu0 %v156
    %374 = vmatprep.subr.mxu0 0.0
    %375 = vmatpush1.msra.mxu0 %v157
    %376 = vmatprep.subr.mxu0 0.0
    %377 = vmatpush1.msra.mxu0 %v158
    %378 = vmatprep.subr.mxu0 0.0
    %379 = vmatpush1.msra.mxu0 %v159
    %380 = vmatprep.subr.mxu0 0.0
    %381 = vmatpush1.msra.mxu0 0.0
    %382 = vmatprep.subr.mxu0 0.0
    %383 = vmatpush1.msra.mxu0 0.0
    %384 = vmatprep.subr.mxu0 0.0
    %385 = vmatpush1.msra.mxu0 0.0
    %386 = vmatprep.subr.mxu0 0.0
    %387 = vmatpush1.msra.mxu0 0.0
    %388 = vmatprep.subr.mxu0 0.0
    %389 = vmatpush1.msra.mxu0 0.0
    %390 = vmatprep.subr.mxu0 0.0
    %391 = vmatpush1.msra.mxu0 0.0
    %392 = vmatprep.subr.mxu0 0.0
    %393 = vmatpush1.msra.mxu0 0.0
    %394 = vmatprep.subr.mxu0 0.0
    %395 = vmatpush1.msra.mxu0 0.0
    %396 = vmatprep.subr.mxu0 0.0
    %397 = vmatpush1.msra.mxu0 0.0
    %398 = vmatprep.subr.mxu0 0.0
    %399 = vmatpush1.msra.mxu0 0.0
    %400 = vmatprep.subr.mxu0 0.0
    %401 = vmatpush1.msra.mxu0 0.0
    %402 = vmatprep.subr.mxu0 0.0
    %403 = vmatpush1.msra.mxu0 0.0
    %404 = vmatprep.subr.mxu0 0.0
    %405 = vmatpush1.msra.mxu0 0.0
    %406 = vmatprep.subr.mxu0 0.0
    %407 = vmatpush1.msra.mxu0 0.0
    %408 = vmatprep.subr.mxu0 0.0
    %409 = vmatpush1.msra.mxu0 0.0
    %410 = vmatprep.subr.mxu0 0.0
    %411 = vmatpush1.msra.mxu0 0.0
    %412 = vmatprep.mubr.f32.mxu0 0.0
    %413 = vmatmul.mubr.f32.gmra.mrb[0].mxu0 %v345
    %v414 = vpop.f32.mrb[0].mxu0
    %v415 = vadd.f32 0.0, %v414
    %v416 = vpop.f32.mrb[0].mxu0
    %417 = vdwg.mxu0
    %v418 = vadd.f32 %v347, %v415
    %v419 = vmul.f32 %v418, %v142
    %v420 = vxor.u32 %v419, 2147483648
    %v421 = vmul.f32 %v420, 1.442695
    %v422 = vpow.pop %v421
    %v423 = vadd.f32 %v422, 1.0
    %v424 = vrcp.pop %v423
    %v425 = vmul.f32 1.0, %v424
    %v426 = vmul.f32 %v425, %v142
    %v427 = vadd.f32 %v426, %v143
    %428 = vrot.lane.b32.xlu0 %v427, 96
    %v429 = vpop.permute.xlu0 %428
    %430 = vrot.lane.b32.xlu0 %v427, 64
    %v431 = vpop.permute.xlu0 %430
    %432 = vrot.lane.b32.xlu0 %v427, 32
    %v433 = vpop.permute.xlu0 %432
    %v434 = vmul.f32 %v429, %v343
    %v435 = vmul.f32 %v427, %v431
    %v436 = vadd.f32 %v434, %v435
    %v437 = vtanh.pop %v436
    %v438 = vmul.f32 %v433, %v437
    %s439 = scalar_lea.vmem [#allocation2], 6
    %v440 = vld [vmem:[%s439] sm:$0x3]
    %441 = vmatprep.subr.mxu0 0.0
    %442 = vmatpush1.msra.mxu0 %v144
    %443 = vmatprep.subr.mxu0 0.0
    %444 = vmatpush1.msra.mxu0 %v145
    %445 = vmatprep.subr.mxu0 0.0
    %446 = vmatpush1.msra.mxu0 %v146
    %447 = vmatprep.subr.mxu0 0.0
    %448 = vmatpush1.msra.mxu0 %v147
    %449 = vmatprep.subr.mxu0 0.0
    %450 = vmatpush1.msra.mxu0 %v148
    %451 = vmatprep.subr.mxu0 0.0
    %452 = vmatpush1.msra.mxu0 %v149
    %453 = vmatprep.subr.mxu0 0.0
    %454 = vmatpush1.msra.mxu0 %v150
    %455 = vmatprep.subr.mxu0 0.0
    %456 = vmatpush1.msra.mxu0 %v151
    %457 = vmatprep.subr.mxu0 0.0
    %458 = vmatpush1.msra.mxu0 %v152
    %459 = vmatprep.subr.mxu0 0.0
    %460 = vmatpush1.msra.mxu0 %v153
    %461 = vmatprep.subr.mxu0 0.0
    %462 = vmatpush1.msra.mxu0 %v154
    %463 = vmatprep.subr.mxu0 0.0
    %464 = vmatpush1.msra.mxu0 %v155
    %465 = vmatprep.subr.mxu0 0.0
    %466 = vmatpush1.msra.mxu0 %v156
    %467 = vmatprep.subr.mxu0 0.0
    %468 = vmatpush1.msra.mxu0 %v157
    %469 = vmatprep.subr.mxu0 0.0
    %470 = vmatpush1.msra.mxu0 %v158
    %471 = vmatprep.subr.mxu0 0.0
    %472 = vmatpush1.msra.mxu0 %v159
    %473 = vmatprep.subr.mxu0 0.0
    %474 = vmatpush1.msra.mxu0 0.0
    %475 = vmatprep.subr.mxu0 0.0
    %476 = vmatpush1.msra.mxu0 0.0
    %477 = vmatprep.subr.mxu0 0.0
    %478 = vmatpush1.msra.mxu0 0.0
    %479 = vmatprep.subr.mxu0 0.0
    %480 = vmatpush1.msra.mxu0 0.0
    %481 = vmatprep.subr.mxu0 0.0
    %482 = vmatpush1.msra.mxu0 0.0
    %483 = vmatprep.subr.mxu0 0.0
    %484 = vmatpush1.msra.mxu0 0.0
    %485 = vmatprep.subr.mxu0 0.0
    %486 = vmatpush1.msra.mxu0 0.0
    %487 = vmatprep.subr.mxu0 0.0
    %488 = vmatpush1.msra.mxu0 0.0
    %489 = vmatprep.subr.mxu0 0.0
    %490 = vmatpush1.msra.mxu0 0.0
    %491 = vmatprep.subr.mxu0 0.0
    %492 = vmatpush1.msra.mxu0 0.0
    %493 = vmatprep.subr.mxu0 0.0
    %494 = vmatpush1.msra.mxu0 0.0
    %495 = vmatprep.subr.mxu0 0.0
    %496 = vmatpush1.msra.mxu0 0.0
    %497 = vmatprep.subr.mxu0 0.0
    %498 = vmatpush1.msra.mxu0 0.0
    %499 = vmatprep.subr.mxu0 0.0
    %500 = vmatpush1.msra.mxu0 0.0
    %501 = vmatprep.subr.mxu0 0.0
    %502 = vmatpush1.msra.mxu0 0.0
    %503 = vmatprep.subr.mxu0 0.0
    %504 = vmatpush1.msra.mxu0 0.0
    %505 = vmatprep.mubr.f32.mxu0 0.0
    %506 = vmatmul.mubr.f32.gmra.mrb[0].mxu0 %v438
    %v507 = vpop.f32.mrb[0].mxu0
    %v508 = vadd.f32 0.0, %v507
    %v509 = vpop.f32.mrb[0].mxu0
    %510 = vdwg.mxu0
    %v511 = vadd.f32 %v440, %v508
    %v512 = vmul.f32 %v511, %v142
    %v513 = vxor.u32 %v512, 2147483648
    %v514 = vmul.f32 %v513, 1.442695
    %v515 = vpow.pop %v514
    %v516 = vadd.f32 %v515, 1.0
    %v517 = vrcp.pop %v516
    %v518 = vmul.f32 1.0, %v517
    %v519 = vmul.f32 %v518, %v142
    %v520 = vadd.f32 %v519, %v143
    %521 = vrot.lane.b32.xlu0 %v520, 96
    %v522 = vpop.permute.xlu0 %521
    %523 = vrot.lane.b32.xlu0 %v520, 64
    %v524 = vpop.permute.xlu0 %523
    %525 = vrot.lane.b32.xlu0 %v520, 32
    %v526 = vpop.permute.xlu0 %525
    %v527 = vmul.f32 %v522, %v436
    %v528 = vmul.f32 %v520, %v524
    %v529 = vadd.f32 %v527, %v528
    %v530 = vtanh.pop %v529
    %v531 = vmul.f32 %v526, %v530
    %s532 = scalar_lea.vmem [#allocation2], 8
    %v533 = vld [vmem:[%s532] sm:$0x3]
    %534 = vmatprep.subr.mxu0 0.0
    %535 = vmatpush1.msra.mxu0 %v144
    %536 = vmatprep.subr.mxu0 0.0
    %537 = vmatpush1.msra.mxu0 %v145
    %538 = vmatprep.subr.mxu0 0.0
    %539 = vmatpush1.msra.mxu0 %v146
    %540 = vmatprep.subr.mxu0 0.0
    %541 = vmatpush1.msra.mxu0 %v147
    %542 = vmatprep.subr.mxu0 0.0
    %543 = vmatpush1.msra.mxu0 %v148
    %544 = vmatprep.subr.mxu0 0.0
    %545 = vmatpush1.msra.mxu0 %v149
    %546 = vmatprep.subr.mxu0 0.0
    %547 = vmatpush1.msra.mxu0 %v150
    %548 = vmatprep.subr.mxu0 0.0
    %549 = vmatpush1.msra.mxu0 %v151
    %550 = vmatprep.subr.mxu0 0.0
    %551 = vmatpush1.msra.mxu0 %v152
    %552 = vmatprep.subr.mxu0 0.0
    %553 = vmatpush1.msra.mxu0 %v153
    %554 = vmatprep.subr.mxu0 0.0
    %555 = vmatpush1.msra.mxu0 %v154
    %556 = vmatprep.subr.mxu0 0.0
    %557 = vmatpush1.msra.mxu0 %v155
    %558 = vmatprep.subr.mxu0 0.0
    %559 = vmatpush1.msra.mxu0 %v156
    %560 = vmatprep.subr.mxu0 0.0
    %561 = vmatpush1.msra.mxu0 %v157
    %562 = vmatprep.subr.mxu0 0.0
    %563 = vmatpush1.msra.mxu0 %v158
    %564 = vmatprep.subr.mxu0 0.0
    %565 = vmatpush1.msra.mxu0 %v159
    %566 = vmatprep.subr.mxu0 0.0
    %567 = vmatpush1.msra.mxu0 0.0
    %568 = vmatprep.subr.mxu0 0.0
    %569 = vmatpush1.msra.mxu0 0.0
    %570 = vmatprep.subr.mxu0 0.0
    %571 = vmatpush1.msra.mxu0 0.0
    %572 = vmatprep.subr.mxu0 0.0
    %573 = vmatpush1.msra.mxu0 0.0
    %574 = vmatprep.subr.mxu0 0.0
    %575 = vmatpush1.msra.mxu0 0.0
    %576 = vmatprep.subr.mxu0 0.0
    %577 = vmatpush1.msra.mxu0 0.0
    %578 = vmatprep.subr.mxu0 0.0
    %579 = vmatpush1.msra.mxu0 0.0
    %580 = vmatprep.subr.mxu0 0.0
    %581 = vmatpush1.msra.mxu0 0.0
    %582 = vmatprep.subr.mxu0 0.0
    %583 = vmatpush1.msra.mxu0 0.0
    %584 = vmatprep.subr.mxu0 0.0
    %585 = vmatpush1.msra.mxu0 0.0
    %586 = vmatprep.subr.mxu0 0.0
    %587 = vmatpush1.msra.mxu0 0.0
    %588 = vmatprep.subr.mxu0 0.0
    %589 = vmatpush1.msra.mxu0 0.0
    %590 = vmatprep.subr.mxu0 0.0
    %591 = vmatpush1.msra.mxu0 0.0
    %592 = vmatprep.subr.mxu0 0.0
    %593 = vmatpush1.msra.mxu0 0.0
    %594 = vmatprep.subr.mxu0 0.0
    %595 = vmatpush1.msra.mxu0 0.0
    %596 = vmatprep.subr.mxu0 0.0
    %597 = vmatpush1.msra.mxu0 0.0
    %598 = vmatprep.mubr.f32.mxu0 0.0
    %599 = vmatmul.mubr.f32.gmra.mrb[0].mxu0 %v531
    %v600 = vpop.f32.mrb[0].mxu0
    %v601 = vadd.f32 0.0, %v600
    %v602 = vpop.f32.mrb[0].mxu0
    %603 = vdwg.mxu0
    %v604 = vadd.f32 %v533, %v601
    %v605 = vmul.f32 %v604, %v142
    %v606 = vxor.u32 %v605, 2147483648
    %v607 = vmul.f32 %v606, 1.442695
    %v608 = vpow.pop %v607
    %v609 = vadd.f32 %v608, 1.0
    %v610 = vrcp.pop %v609
    %v611 = vmul.f32 1.0, %v610
    %v612 = vmul.f32 %v611, %v142
    %v613 = vadd.f32 %v612, %v143
    %614 = vrot.lane.b32.xlu0 %v613, 96
    %v615 = vpop.permute.xlu0 %614
    %616 = vrot.lane.b32.xlu0 %v613, 64
    %v617 = vpop.permute.xlu0 %616
    %618 = vrot.lane.b32.xlu0 %v613, 32
    %v619 = vpop.permute.xlu0 %618
    %v620 = vmul.f32 %v615, %v529
    %v621 = vmul.f32 %v613, %v617
    %v622 = vadd.f32 %v620, %v621
    %v623 = vtanh.pop %v622
    %v624 = vmul.f32 %v619, %v623
    %s625 = scalar_lea.vmem [#allocation2], 10
    %v626 = vld [vmem:[%s625] sm:$0x3]
    %627 = vmatprep.subr.mxu0 0.0
    %628 = vmatpush1.msra.mxu0 %v144
    %629 = vmatprep.subr.mxu0 0.0
    %630 = vmatpush1.msra.mxu0 %v145
    %631 = vmatprep.subr.mxu0 0.0
    %632 = vmatpush1.msra.mxu0 %v146
    %633 = vmatprep.subr.mxu0 0.0
    %634 = vmatpush1.msra.mxu0 %v147
    %635 = vmatprep.subr.mxu0 0.0
    %636 = vmatpush1.msra.mxu0 %v148
    %637 = vmatprep.subr.mxu0 0.0
    %638 = vmatpush1.msra.mxu0 %v149
    %639 = vmatprep.subr.mxu0 0.0
    %640 = vmatpush1.msra.mxu0 %v150
    %641 = vmatprep.subr.mxu0 0.0
    %642 = vmatpush1.msra.mxu0 %v151
    %643 = vmatprep.subr.mxu0 0.0
    %644 = vmatpush1.msra.mxu0 %v152
    %645 = vmatprep.subr.mxu0 0.0
    %646 = vmatpush1.msra.mxu0 %v153
    %647 = vmatprep.subr.mxu0 0.0
    %648 = vmatpush1.msra.mxu0 %v154
    %649 = vmatprep.subr.mxu0 0.0
    %650 = vmatpush1.msra.mxu0 %v155
    %651 = vmatprep.subr.mxu0 0.0
    %652 = vmatpush1.msra.mxu0 %v156
    %653 = vmatprep.subr.mxu0 0.0
    %654 = vmatpush1.msra.mxu0 %v157
    %655 = vmatprep.subr.mxu0 0.0
    %656 = vmatpush1.msra.mxu0 %v158
    %657 = vmatprep.subr.mxu0 0.0
    %658 = vmatpush1.msra.mxu0 %v159
    %659 = vmatprep.subr.mxu0 0.0
    %660 = vmatpush1.msra.mxu0 0.0
    %661 = vmatprep.subr.mxu0 0.0
    %662 = vmatpush1.msra.mxu0 0.0
    %663 = vmatprep.subr.mxu0 0.0
    %664 = vmatpush1.msra.mxu0 0.0
    %665 = vmatprep.subr.mxu0 0.0
    %666 = vmatpush1.msra.mxu0 0.0
    %667 = vmatprep.subr.mxu0 0.0
    %668 = vmatpush1.msra.mxu0 0.0
    %669 = vmatprep.subr.mxu0 0.0
    %670 = vmatpush1.msra.mxu0 0.0
    %671 = vmatprep.subr.mxu0 0.0
    %672 = vmatpush1.msra.mxu0 0.0
    %673 = vmatprep.subr.mxu0 0.0
    %674 = vmatpush1.msra.mxu0 0.0
    %675 = vmatprep.subr.mxu0 0.0
    %676 = vmatpush1.msra.mxu0 0.0
    %677 = vmatprep.subr.mxu0 0.0
    %678 = vmatpush1.msra.mxu0 0.0
    %679 = vmatprep.subr.mxu0 0.0
    %680 = vmatpush1.msra.mxu0 0.0
    %681 = vmatprep.subr.mxu0 0.0
    %682 = vmatpush1.msra.mxu0 0.0
    %683 = vmatprep.subr.mxu0 0.0
    %684 = vmatpush1.msra.mxu0 0.0
    %685 = vmatprep.subr.mxu0 0.0
    %686 = vmatpush1.msra.mxu0 0.0
    %687 = vmatprep.subr.mxu0 0.0
    %688 = vmatpush1.msra.mxu0 0.0
    %689 = vmatprep.subr.mxu0 0.0
    %690 = vmatpush1.msra.mxu0 0.0
    %691 = vmatprep.mubr.f32.mxu0 0.0
    %692 = vmatmul.mubr.f32.gmra.mrb[0].mxu0 %v624
    %v693 = vpop.f32.mrb[0].mxu0
    %v694 = vadd.f32 0.0, %v693
    %v695 = vpop.f32.mrb[0].mxu0
    %696 = vdwg.mxu0
    %v697 = vadd.f32 %v626, %v694
    %v698 = vmul.f32 %v697, %v142
    %v699 = vxor.u32 %v698, 2147483648
    %v700 = vmul.f32 %v699, 1.442695
    %v701 = vpow.pop %v700
    %v702 = vadd.f32 %v701, 1.0
    %v703 = vrcp.pop %v702
    %v704 = vmul.f32 1.0, %v703
    %v705 = vmul.f32 %v704, %v142
    %v706 = vadd.f32 %v705, %v143
    %707 = vrot.lane.b32.xlu0 %v706, 96
    %v708 = vpop.permute.xlu0 %707
    %709 = vrot.lane.b32.xlu0 %v706, 64
    %v710 = vpop.permute.xlu0 %709
    %711 = vrot.lane.b32.xlu0 %v706, 32
    %v712 = vpop.permute.xlu0 %711
    %v713 = vmul.f32 %v708, %v622
    %v714 = vmul.f32 %v706, %v710
    %v715 = vadd.f32 %v713, %v714
    %v716 = vtanh.pop %v715
    %v717 = vmul.f32 %v712, %v716
    %s718 = scalar_lea.vmem [#allocation2], 12
    %v719 = vld [vmem:[%s718] sm:$0x3]
    %720 = vmatprep.subr.mxu0 0.0
    %721 = vmatpush1.msra.mxu0 %v144
    %722 = vmatprep.subr.mxu0 0.0
    %723 = vmatpush1.msra.mxu0 %v145
    %724 = vmatprep.subr.mxu0 0.0
    %725 = vmatpush1.msra.mxu0 %v146
    %726 = vmatprep.subr.mxu0 0.0
    %727 = vmatpush1.msra.mxu0 %v147
    %728 = vmatprep.subr.mxu0 0.0
    %729 = vmatpush1.msra.mxu0 %v148
    %730 = vmatprep.subr.mxu0 0.0
    %731 = vmatpush1.msra.mxu0 %v149
    %732 = vmatprep.subr.mxu0 0.0
    %733 = vmatpush1.msra.mxu0 %v150
    %734 = vmatprep.subr.mxu0 0.0
    %735 = vmatpush1.msra.mxu0 %v151
    %736 = vmatprep.subr.mxu0 0.0
    %737 = vmatpush1.msra.mxu0 %v152
    %738 = vmatprep.subr.mxu0 0.0
    %739 = vmatpush1.msra.mxu0 %v153
    %740 = vmatprep.subr.mxu0 0.0
    %741 = vmatpush1.msra.mxu0 %v154
    %742 = vmatprep.subr.mxu0 0.0
    %743 = vmatpush1.msra.mxu0 %v155
    %744 = vmatprep.subr.mxu0 0.0
    %745 = vmatpush1.msra.mxu0 %v156
    %746 = vmatprep.subr.mxu0 0.0
    %747 = vmatpush1.msra.mxu0 %v157
    %748 = vmatprep.subr.mxu0 0.0
    %749 = vmatpush1.msra.mxu0 %v158
    %750 = vmatprep.subr.mxu0 0.0
    %751 = vmatpush1.msra.mxu0 %v159
    %752 = vmatprep.subr.mxu0 0.0
    %753 = vmatpush1.msra.mxu0 0.0
    %754 = vmatprep.subr.mxu0 0.0
    %755 = vmatpush1.msra.mxu0 0.0
    %756 = vmatprep.subr.mxu0 0.0
    %757 = vmatpush1.msra.mxu0 0.0
    %758 = vmatprep.subr.mxu0 0.0
    %759 = vmatpush1.msra.mxu0 0.0
    %760 = vmatprep.subr.mxu0 0.0
    %761 = vmatpush1.msra.mxu0 0.0
    %762 = vmatprep.subr.mxu0 0.0
    %763 = vmatpush1.msra.mxu0 0.0
    %764 = vmatprep.subr.mxu0 0.0
    %765 = vmatpush1.msra.mxu0 0.0
    %766 = vmatprep.subr.mxu0 0.0
    %767 = vmatpush1.msra.mxu0 0.0
    %768 = vmatprep.subr.mxu0 0.0
    %769 = vmatpush1.msra.mxu0 0.0
    %770 = vmatprep.subr.mxu0 0.0
    %771 = vmatpush1.msra.mxu0 0.0
    %772 = vmatprep.subr.mxu0 0.0
    %773 = vmatpush1.msra.mxu0 0.0
    %774 = vmatprep.subr.mxu0 0.0
    %775 = vmatpush1.msra.mxu0 0.0
    %776 = vmatprep.subr.mxu0 0.0
    %777 = vmatpush1.msra.mxu0 0.0
    %778 = vmatprep.subr.mxu0 0.0
    %779 = vmatpush1.msra.mxu0 0.0
    %780 = vmatprep.subr.mxu0 0.0
    %781 = vmatpush1.msra.mxu0 0.0
    %782 = vmatprep.subr.mxu0 0.0
    %783 = vmatpush1.msra.mxu0 0.0
    %784 = vmatprep.mubr.f32.mxu0 0.0
    %785 = vmatmul.mubr.f32.gmra.mrb[0].mxu0 %v717
    %v786 = vpop.f32.mrb[0].mxu0
    %v787 = vadd.f32 0.0, %v786
    %v788 = vpop.f32.mrb[0].mxu0
    %789 = vdwg.mxu0
    %v790 = vadd.f32 %v719, %v787
    %v791 = vmul.f32 %v790, %v142
    %v792 = vxor.u32 %v791, 2147483648
    %v793 = vmul.f32 %v792, 1.442695
    %v794 = vpow.pop %v793
    %v795 = vadd.f32 %v794, 1.0
    %v796 = vrcp.pop %v795
    %v797 = vmul.f32 1.0, %v796
    %v798 = vmul.f32 %v797, %v142
    %v799 = vadd.f32 %v798, %v143
    %800 = vrot.lane.b32.xlu0 %v799, 96
    %v801 = vpop.permute.xlu0 %800
    %802 = vrot.lane.b32.xlu0 %v799, 64
    %v803 = vpop.permute.xlu0 %802
    %804 = vrot.lane.b32.xlu0 %v799, 32
    %v805 = vpop.permute.xlu0 %804
    %v806 = vmul.f32 %v801, %v715
    %v807 = vmul.f32 %v799, %v803
    %v808 = vadd.f32 %v806, %v807
    %v809 = vtanh.pop %v808
    %v810 = vmul.f32 %v805, %v809
    %s811 = scalar_lea.vmem [#allocation2], 14
    %v812 = vld [vmem:[%s811] sm:$0x3]
    %813 = vmatprep.subr.mxu0 0.0
    %814 = vmatpush1.msra.mxu0 %v144
    %815 = vmatprep.subr.mxu0 0.0
    %816 = vmatpush1.msra.mxu0 %v145
    %817 = vmatprep.subr.mxu0 0.0
    %818 = vmatpush1.msra.mxu0 %v146
    %819 = vmatprep.subr.mxu0 0.0
    %820 = vmatpush1.msra.mxu0 %v147
    %821 = vmatprep.subr.mxu0 0.0
    %822 = vmatpush1.msra.mxu0 %v148
    %823 = vmatprep.subr.mxu0 0.0
    %824 = vmatpush1.msra.mxu0 %v149
    %825 = vmatprep.subr.mxu0 0.0
    %826 = vmatpush1.msra.mxu0 %v150
    %827 = vmatprep.subr.mxu0 0.0
    %828 = vmatpush1.msra.mxu0 %v151
    %829 = vmatprep.subr.mxu0 0.0
    %830 = vmatpush1.msra.mxu0 %v152
    %831 = vmatprep.subr.mxu0 0.0
    %832 = vmatpush1.msra.mxu0 %v153
    %833 = vmatprep.subr.mxu0 0.0
    %834 = vmatpush1.msra.mxu0 %v154
    %835 = vmatprep.subr.mxu0 0.0
    %836 = vmatpush1.msra.mxu0 %v155
    %837 = vmatprep.subr.mxu0 0.0
    %838 = vmatpush1.msra.mxu0 %v156
    %839 = vmatprep.subr.mxu0 0.0
    %840 = vmatpush1.msra.mxu0 %v157
    %841 = vmatprep.subr.mxu0 0.0
    %842 = vmatpush1.msra.mxu0 %v158
    %843 = vmatprep.subr.mxu0 0.0
    %844 = vmatpush1.msra.mxu0 %v159
    %845 = vmatprep.subr.mxu0 0.0
    %846 = vmatpush1.msra.mxu0 0.0
    %847 = vmatprep.subr.mxu0 0.0
    %848 = vmatpush1.msra.mxu0 0.0
    %849 = vmatprep.subr.mxu0 0.0
    %850 = vmatpush1.msra.mxu0 0.0
    %851 = vmatprep.subr.mxu0 0.0
    %852 = vmatpush1.msra.mxu0 0.0
    %853 = vmatprep.subr.mxu0 0.0
    %854 = vmatpush1.msra.mxu0 0.0
    %855 = vmatprep.subr.mxu0 0.0
    %856 = vmatpush1.msra.mxu0 0.0
    %857 = vmatprep.subr.mxu0 0.0
    %858 = vmatpush1.msra.mxu0 0.0
    %859 = vmatprep.subr.mxu0 0.0
    %860 = vmatpush1.msra.mxu0 0.0
    %861 = vmatprep.subr.mxu0 0.0
    %862 = vmatpush1.msra.mxu0 0.0
    %863 = vmatprep.subr.mxu0 0.0
    %864 = vmatpush1.msra.mxu0 0.0
    %865 = vmatprep.subr.mxu0 0.0
    %866 = vmatpush1.msra.mxu0 0.0
    %867 = vmatprep.subr.mxu0 0.0
    %868 = vmatpush1.msra.mxu0 0.0
    %869 = vmatprep.subr.mxu0 0.0
    %870 = vmatpush1.msra.mxu0 0.0
    %871 = vmatprep.subr.mxu0 0.0
    %872 = vmatpush1.msra.mxu0 0.0
    %873 = vmatprep.subr.mxu0 0.0
    %874 = vmatpush1.msra.mxu0 0.0
    %875 = vmatprep.subr.mxu0 0.0
    %876 = vmatpush1.msra.mxu0 0.0
    %877 = vmatprep.mubr.f32.mxu0 0.0
    %878 = vmatmul.mubr.f32.gmra.mrb[0].mxu0 %v810
    %v879 = vpop.f32.mrb[0].mxu0
    %v880 = vadd.f32 0.0, %v879
    %v881 = vpop.f32.mrb[0].mxu0
    %882 = vdwg.mxu0
    %v883 = vadd.f32 %v812, %v880
    %v884 = vmul.f32 %v883, %v142
    %v885 = vxor.u32 %v884, 2147483648
    %v886 = vmul.f32 %v885, 1.442695
    %v887 = vpow.pop %v886
    %v888 = vadd.f32 %v887, 1.0
    %v889 = vrcp.pop %v888
    %v890 = vmul.f32 1.0, %v889
    %v891 = vmul.f32 %v890, %v142
    %v892 = vadd.f32 %v891, %v143
    %893 = vrot.lane.b32.xlu0 %v892, 96
    %v894 = vpop.permute.xlu0 %893
    %895 = vrot.lane.b32.xlu0 %v892, 64
    %v896 = vpop.permute.xlu0 %895
    %897 = vrot.lane.b32.xlu0 %v892, 32
    %v898 = vpop.permute.xlu0 %897
    %v899 = vmul.f32 %v894, %v808
    %v900 = vmul.f32 %v892, %v896
    %v901 = vadd.f32 %v899, %v900
    %v902 = vtanh.pop %v901
    %v903 = vmul.f32 %v898, %v902
    %v905 = vlaneseq
    %v906 = vshrl.u32 %v905, 7
    %v907 = vsub.s32 0, %v906
    %v908 = vrot.slane %v160, %v907
    %v910 = vmul.f32 %v903, %v908
    %vm911 = vcmask 1041408
    %v912 = vsel %vm911, %v910, 0.0
    %913 = vadd.xlane.f32.xlu0 %v912
    %v914 = vpop.xlane.xlu0 %913
    %v915 = vld [vmem:[#allocation3] sm:$0x1]
    %v917 = vlaneseq
    %v918 = vshrl.u32 %v917, 7
    %v919 = vsub.s32 0, %v918
    %v920 = vrot.slane %v915, %v919
    %v922 = vadd.f32 %v914, %v920
    %vm923 = vcmask 1024
    %924 = vst.msk [vmem:[%s6] sm:$0x3] %vm923, %v922
    // Predicated region
    $region30: #{tpu_custom_call.1} parent=1 // pred_check
      _
    $region31: #{tpu_custom_call.1} parent=1 // pred_check_branch
      %926 = sbr.rel (0) target = $region33
    $region32: #{tpu_custom_call.1} parent=1 // pred_region
      _
    $region33: #{tpu_custom_call.1} parent=1 // pred_fallthru
      _
    // Predicated region
    $region34: #{tpu_custom_call.1} parent=1 // pred_check
      _
    $region35: #{tpu_custom_call.1} parent=1 // pred_check_branch
      %928 = sbr.rel (0) target = $region37
    $region36: #{tpu_custom_call.1} parent=1 // pred_region
      _
    $region37: #{tpu_custom_call.1} parent=1 // pred_fallthru
      _
    %929 = vsyncpa [#allocation5], 1

</llo_original>
